<compile_context>
chip_gen: v7x
topology: tpu7x:2x2x1
jax: 0.10.0
libtpu: 0.0.40
codegen_flags: <defaults>
</compile_context>

<pallas_src>
import numpy as np
import jax
import jax.numpy as jnp
from jax import lax
from jax.experimental import pallas as pl
from jax.experimental.pallas import tpu as pltpu

BS_DIM = 52
NUM_LANDMARKS = 68
LMK_DIM = 2 * NUM_LANDMARKS  # 136

# loss weights (defaults of KoeMorphLoss.__init__)
W_MSE, W_L1, W_PERC, W_TEMP = 1.0, 0.1, 0.5, 0.2
W_SPARS, W_SMOOTH, W_LMK, W_VEL = 0.01, 0.1, 0.3, 0.05
EPS = 1e-8

# output slot names (slot 8 is the weighted total loss)
_OUT_NAMES = [
    "mse", "l1", "perceptual", "temporal", "velocity", "sparsity",
    "smoothness", "landmark", "total", "mae", "rmse", "correlation",
    "precision", "recall", "f1_score", "range_ratio",
]


def _bsum(x, b):
    """Sum over the tiny batch (sublane) axis via unrolled row adds -> (1, L)."""
    acc = x[0:1, :]
    for i in range(1, b):
        acc = acc + x[i:i + 1, :]
    return acc


def _bmax(x, b):
    acc = x[0:1, :]
    for i in range(1, b):
        acc = jnp.maximum(acc, x[i:i + 1, :])
    return acc


def _make_kernel(b, aux_off, gram_off):
    n_el = float(b * BS_DIM)

    def kernel(in_ref, out_ref):
        # packed input slab (rows x 52 lanes, f32):
        #   [0 : 4b)          pred / target / prev_pred / prev_target
        #   aux_off           audio energy (lanes 0:b, rest zero)
        #   aux_off + 1       perceptual per-lane weights  group_w / (b*group_size)
        #   aux_off + 2       mouth mask / 20
        #   [gram_off : +52)  G = W^T W (landmark Gram matrix)
        pred = in_ref[0:b, :]
        target = in_ref[b:2 * b, :]
        prev_pred = in_ref[2 * b:3 * b, :]
        prev_target = in_ref[3 * b:4 * b, :]
        ae_row = in_ref[aux_off:aux_off + 1, :]
        lane_w = in_ref[aux_off + 1:aux_off + 2, :]
        mouth_w = in_ref[aux_off + 2:aux_off + 3, :]
        gram = in_ref[gram_off:gram_off + BS_DIM, :]

        # ---- shared per-element products (VPU) ------------------------------
        d = pred - target
        d2 = d * d
        ad = jnp.abs(d)
        vd = (pred - prev_pred) - (target - prev_target)
        p_act = (pred > 0.1).astype(jnp.float32)
        t_act = (target > 0.1).astype(jnp.float32)

        # landmark quadratic form: mean((d W^T)^2) == sum(d * (d G)) / (b*136)
        dG = jnp.dot(d, gram, preferred_element_type=jnp.float32)       # (b, 52)

        # smoothness |diff| padded back to 52 lanes
        sd = jnp.abs(pred[:, 1:] - pred[:, :-1])                        # (b, 51)
        sd_row = jnp.concatenate(
            [_bsum(sd, b), jnp.zeros((1, 1), jnp.float32)], axis=1)     # (1, 52)

        # ---- ONE fused lane reduction over a sublane-stacked slab -----------
        d2row = _bsum(d2, b)
        rows = [
            d2row,                    # 0  mse
            _bsum(ad, b),             # 1  l1 / mae
            d2row * lane_w,           # 2  perceptual group MSEs
            _bsum(vd * vd, b),        # 3  temporal
            _bsum(jnp.abs(vd), b),    # 4  velocity
            _bsum(jnp.abs(pred), b),  # 5  sparsity
            sd_row,                   # 6  smoothness
            _bsum(d * dG, b),         # 7  landmark
            _bsum(p_act * t_act, b),  # 8  tp
            _bsum(p_act, b),          # 9  sum(pred_active)
            _bsum(t_act, b),          # 10 sum(target_active)
            pred * mouth_w,           # 11 .. 11+b-1 : mouth activation per row
            pred,                     # per-row sum(p)   (Pearson, single-pass)
            target,                   # per-row sum(t)
            pred * pred,              # per-row sum(p^2)
            target * target,          # per-row sum(t^2)
            pred * target,            # per-row sum(p*t)
        ]
        S = jnp.concatenate(rows, axis=0)                 # (11 + 6b, 52)
        col = jnp.sum(S, axis=1, keepdims=True)           # (11 + 6b, 1)

        # ---- scalar epilogue -------------------------------------------------
        mse = col[0, 0] / n_el
        l1 = col[1, 0] / n_el
        perc_g = col[2, 0]
        temporal = col[3, 0] / n_el
        velocity = col[4, 0] / n_el
        sparsity = col[5, 0] / n_el
        smoothness = col[6, 0] / (b * (BS_DIM - 1.0))
        landmark = jnp.maximum(col[7, 0] / (b * float(LMK_DIM)), 0.0)
        tp = col[8, 0]
        fp = col[9, 0] - tp
        fn = col[10, 0] - tp

        # audio-visual cosine (pure scalar chain; audio energy packed in ae_row)
        mm, aa, ma = 0.0, 0.0, 0.0
        for i in range(b):
            mi = col[11 + i, 0]
            ai = ae_row[0, i]
            mm = mm + mi * mi
            aa = aa + ai * ai
            ma = ma + mi * ai
        inv_m = lax.rsqrt(jnp.maximum(mm, 1e-24))        # F.normalize eps=1e-12
        inv_a = lax.rsqrt(jnp.maximum(aa, 1e-24))
        nm2 = mm * inv_m * inv_m
        na2 = aa * inv_a * inv_a
        cos = (ma * inv_m * inv_a
               * lax.rsqrt(jnp.maximum(nm2, 1e-16))      # cosine_sim eps=1e-8
               * lax.rsqrt(jnp.maximum(na2, 1e-16)))
        perceptual = perc_g + 0.5 * (1.0 - cos)

        total = (W_MSE * mse + W_L1 * l1 + W_PERC * perceptual
                 + W_TEMP * temporal + W_VEL * velocity + W_SPARS * sparsity
                 + W_SMOOTH * smoothness + W_LMK * landmark)

        # ---- additional metrics ---------------------------------------------
        rmse = jnp.sqrt(mse)

        # single-pass per-row Pearson correlation (NaN rows filtered, as torch)
        nf = float(BS_DIM)
        corr_sum, n_valid = 0.0, 0.0
        for i in range(b):
            sp = col[11 + b + i, 0]
            st = col[11 + 2 * b + i, 0]
            spp = col[11 + 3 * b + i, 0]
            stt = col[11 + 4 * b + i, 0]
            spt = col[11 + 5 * b + i, 0]
            cov = spt - sp * st / nf
            vp = spp - sp * sp / nf
            vt = stt - st * st / nf
            ci = cov * lax.rsqrt(vp * vt)
            valid = ci == ci                       # isnan filter (keep +-inf)
            n_valid = n_valid + valid.astype(jnp.float32)
            corr_sum = corr_sum + jnp.where(valid, ci, 0.0)
        correlation = jnp.where(n_valid > 0.0,
                                corr_sum / jnp.maximum(n_valid, 1.0), 0.0)

        precision = tp / (tp + fp + EPS)
        recall = tp / (tp + fn + EPS)
        f1 = 2.0 * precision * recall / (precision + recall + EPS)

        # range ratio via one stacked max reduce
        MX = jnp.concatenate(
            [_bmax(pred, b), _bmax(-pred, b),
             _bmax(target, b), _bmax(-target, b)], axis=0)      # (4, 52)
        mx = jnp.max(MX, axis=1, keepdims=True)                  # (4, 1)
        range_ratio = (mx[0, 0] + mx[1, 0]) / (mx[2, 0] + mx[3, 0] + EPS)

        # ---- epilogue: scalar stores into the (16,) SMEM output -------------
        out_ref[0] = mse
        out_ref[1] = l1
        out_ref[2] = perceptual
        out_ref[3] = temporal
        out_ref[4] = velocity
        out_ref[5] = sparsity
        out_ref[6] = smoothness
        out_ref[7] = landmark
        out_ref[8] = total
        out_ref[9] = l1                 # mae == l1
        out_ref[10] = rmse
        out_ref[11] = correlation
        out_ref[12] = precision
        out_ref[13] = recall
        out_ref[14] = f1
        out_ref[15] = range_ratio

    return kernel


def precompute_gram(lmk_weight):
    """G = W^T W of the frozen landmark projection; hoist out of the step."""
    w = lmk_weight.astype(jnp.float32)                           # (136, 52)
    return jnp.dot(w.T, w, preferred_element_type=jnp.float32)   # (52, 52)


def koemorph_loss(pred, target, prev_pred, prev_target, audio, gram,
                  return_metrics=True):
    b = pred.shape[0]
    aux_off = 4 * b
    gram_off = ((aux_off + 3 + 7) // 8) * 8          # sublane-aligned Gram rows

    # trace-time constant rows: perceptual lane weights and mouth mask / 20
    lane_w = np.zeros((1, BS_DIM), np.float32)
    lane_w[0, 0:12] = 1.0 / (b * 12.0)    # eye,   w=1.0
    lane_w[0, 12:32] = 2.0 / (b * 20.0)   # mouth, w=2.0
    lane_w[0, 32:44] = 1.0 / (b * 12.0)   # brow,  w=1.0
    lane_w[0, 44:52] = 1.5 / (b * 8.0)    # jaw,   w=1.5
    mouth_w = np.zeros((1, BS_DIM), np.float32)
    mouth_w[0, 12:32] = 1.0 / 20.0

    # hoisted audio-energy reduction (plain XLA): mean_t ||audio[:, t, :]||_2
    audio = audio.astype(jnp.float32)
    energy = jnp.mean(jnp.sqrt(jnp.sum(audio * audio, axis=2)), axis=1)   # (b,)
    ae_row = jnp.zeros((1, BS_DIM), jnp.float32).at[0, :b].set(energy)

    # ONE packed VMEM input slab -> one DMA
    pieces = [
        jnp.concatenate([pred, target, prev_pred, prev_target],
                        axis=0).astype(jnp.float32),             # (4b, 52)
        ae_row, jnp.asarray(lane_w), jnp.asarray(mouth_w),
    ]
    pad_rows = gram_off - (aux_off + 3)
    if pad_rows:
        pieces.append(jnp.zeros((pad_rows, BS_DIM), jnp.float32))
    pieces.append(gram.astype(jnp.float32))
    slab = jnp.concatenate(pieces, axis=0)                        # (gram_off+52, 52)

    out = pl.pallas_call(
        _make_kernel(b, aux_off, gram_off),
        out_shape=jax.ShapeDtypeStruct((16,), jnp.float32),
        in_specs=[pl.BlockSpec(memory_space=pltpu.MemorySpace.VMEM)],
        out_specs=pl.BlockSpec(memory_space=pltpu.MemorySpace.SMEM),
        compiler_params=pltpu.CompilerParams(allow_input_fusion=[True]),
    )(slab)

    total = out[8]
    if not return_metrics:
        return total
    metrics = {name: out[i] for i, name in enumerate(_OUT_NAMES)
               if name != "total"}
    # the per-term weighted losses (as stored in the torch `losses` dict)
    weighted = {
        "mse": W_MSE * out[0], "l1": W_L1 * out[1],
        "perceptual": W_PERC * out[2], "temporal": W_TEMP * out[3],
        "velocity": W_VEL * out[4], "sparsity": W_SPARS * out[5],
        "smoothness": W_SMOOTH * out[6], "landmark": W_LMK * out[7],
    }
    return total, metrics, weighted


# ------------------------- pure-JAX reference (literal torch math) ----------
def _ref_total(pred, target, prev_pred, prev_target, audio, lmk_weight):
    mse = jnp.mean((pred - target) ** 2)
    l1 = jnp.mean(jnp.abs(pred - target))
    groups = {"mouth": (12, 32, 2.0), "eye": (0, 12, 1.0),
              "brow": (32, 44, 1.0), "jaw": (44, 52, 1.5)}
    perc = 0.0
    for (a, b, w) in groups.values():
        perc = perc + w * jnp.mean((pred[:, a:b] - target[:, a:b]) ** 2)
    mouth_act = jnp.mean(pred[:, 12:32], axis=1)
    energy = jnp.mean(jnp.linalg.norm(audio, axis=2), axis=1)
    m_n = mouth_act / jnp.maximum(jnp.linalg.norm(mouth_act), 1e-12)
    a_n = energy / jnp.maximum(jnp.linalg.norm(energy), 1e-12)
    cos = jnp.sum(m_n * a_n) / (jnp.maximum(jnp.linalg.norm(m_n), 1e-8)
                                * jnp.maximum(jnp.linalg.norm(a_n), 1e-8))
    perc = perc + 0.5 * (1.0 - cos)
    pd, td = pred - prev_pred, target - prev_target
    temporal = jnp.mean((pd - td) ** 2)
    velocity = jnp.mean(jnp.abs(pd - td))
    sparsity = jnp.mean(jnp.abs(pred))
    smooth = jnp.mean(jnp.abs(jnp.diff(pred, axis=1)))
    pl_ = pred @ lmk_weight.T
    tl_ = target @ lmk_weight.T
    landmark = jnp.mean((pl_ - tl_) ** 2)
    return (W_MSE * mse + W_L1 * l1 + W_PERC * perc + W_TEMP * temporal
            + W_VEL * velocity + W_SPARS * sparsity + W_SMOOTH * smooth
            + W_LMK * landmark)


if __name__ == "__main__":
    key = jax.random.PRNGKey(0)
    k1, k2, k3, k4, k5, k6 = jax.random.split(key, 6)

    B, T, F = 2, 8, 32
    pred = jax.random.uniform(k1, (B, BS_DIM), jnp.float32)
    target = jax.random.uniform(k2, (B, BS_DIM), jnp.float32)
    prev_pred = jax.random.uniform(k3, (B, BS_DIM), jnp.float32)
    prev_target = jax.random.uniform(k4, (B, BS_DIM), jnp.float32)
    audio = jax.random.normal(k5, (B, T, F), jnp.float32)
    # deterministic stand-in for nn.Parameter(torch.randn(136, 52) * 0.01)
    lmk_weight = jax.random.normal(k6, (LMK_DIM, BS_DIM), jnp.float32) * 0.01

    gram = precompute_gram(lmk_weight)        # frozen parameter: computed once

    loss_fn = jax.jit(koemorph_loss, static_argnames=("return_metrics",))
    total, metrics, weighted = loss_fn(pred, target, prev_pred, prev_target,
                                       audio, gram)
    total = jax.block_until_ready(total)

    ref = _ref_total(pred, target, prev_pred, prev_target, audio, lmk_weight)
    assert jnp.allclose(total, ref, rtol=2e-3, atol=2e-3), (total, ref)

    print("KERNEL_OK")
</pallas_src>

<mosaic_0001>
module attributes {stable_mosaic.version = 11 : i64} {
  func.func @kernel(%arg0: memref<68x52xf32, #tpu.memory_space<vmem>>, %arg1: memref<16xf32, #tpu.memory_space<smem>>) attributes {dimension_semantics = [], scalar_prefetch = 0 : i64, scratch_operands = 0 : i64, tpu.core_type = #tpu.core_type<tc>} {
    %c0 = arith.constant 0 : index
    %c0_0 = arith.constant 0 : index
    %0 = vector.load %arg0[%c0, %c0_0] : memref<68x52xf32, #tpu.memory_space<vmem>>, vector<2x52xf32>
    %c2 = arith.constant 2 : index
    %c0_1 = arith.constant 0 : index
    %1 = vector.load %arg0[%c2, %c0_1] : memref<68x52xf32, #tpu.memory_space<vmem>>, vector<2x52xf32>
    %c4 = arith.constant 4 : index
    %c0_2 = arith.constant 0 : index
    %2 = vector.load %arg0[%c4, %c0_2] : memref<68x52xf32, #tpu.memory_space<vmem>>, vector<2x52xf32>
    %c6 = arith.constant 6 : index
    %c0_3 = arith.constant 0 : index
    %3 = vector.load %arg0[%c6, %c0_3] : memref<68x52xf32, #tpu.memory_space<vmem>>, vector<2x52xf32>
    %c8 = arith.constant 8 : index
    %c0_4 = arith.constant 0 : index
    %4 = vector.load %arg0[%c8, %c0_4] : memref<68x52xf32, #tpu.memory_space<vmem>>, vector<1x52xf32>
    %c9 = arith.constant 9 : index
    %c0_5 = arith.constant 0 : index
    %5 = vector.load %arg0[%c9, %c0_5] : memref<68x52xf32, #tpu.memory_space<vmem>>, vector<1x52xf32>
    %c10 = arith.constant 10 : index
    %c0_6 = arith.constant 0 : index
    %6 = vector.load %arg0[%c10, %c0_6] : memref<68x52xf32, #tpu.memory_space<vmem>>, vector<1x52xf32>
    %c16 = arith.constant 16 : index
    %c0_7 = arith.constant 0 : index
    %7 = vector.load %arg0[%c16, %c0_7] : memref<68x52xf32, #tpu.memory_space<vmem>>, vector<52x52xf32>
    %8 = arith.subf %0, %1 : vector<2x52xf32>
    %9 = arith.mulf %8, %8 : vector<2x52xf32>
    %10 = math.absf %8 : vector<2x52xf32>
    %11 = arith.subf %0, %2 : vector<2x52xf32>
    %12 = arith.subf %1, %3 : vector<2x52xf32>
    %13 = arith.subf %11, %12 : vector<2x52xf32>
    %cst = arith.constant 1.000000e-01 : f32
    %14 = vector.broadcast %cst : f32 to vector<2x52xf32>
    %15 = arith.cmpf ogt, %0, %14 : vector<2x52xf32>
    %16 = arith.extui %15 : vector<2x52xi1> to vector<2x52xi32>
    %17 = arith.sitofp %16 : vector<2x52xi32> to vector<2x52xf32>
    %cst_8 = arith.constant 1.000000e-01 : f32
    %18 = vector.broadcast %cst_8 : f32 to vector<2x52xf32>
    %19 = arith.cmpf ogt, %1, %18 : vector<2x52xf32>
    %20 = arith.extui %19 : vector<2x52xi1> to vector<2x52xi32>
    %21 = arith.sitofp %20 : vector<2x52xi32> to vector<2x52xf32>
    %cst_9 = arith.constant dense<0.000000e+00> : vector<2x52xf32>
    %22 = tpu.matmul %8, %7, %cst_9 {dimension_numbers = #tpu.dot_dimension_numbers<[1], [0], [0], [1], [0, 0, 1, 1], [], []>} : vector<2x52xf32>, vector<52x52xf32>, vector<2x52xf32> -> vector<2x52xf32>
    %23 = vector.extract_strided_slice %0 {offsets = [0, 1], sizes = [2, 51], strides = [1, 1]} : vector<2x52xf32> to vector<2x51xf32>
    %24 = vector.extract_strided_slice %0 {offsets = [0, 0], sizes = [2, 51], strides = [1, 1]} : vector<2x52xf32> to vector<2x51xf32>
    %25 = arith.subf %23, %24 : vector<2x51xf32>
    %26 = math.absf %25 : vector<2x51xf32>
    %27 = vector.extract_strided_slice %26 {offsets = [0, 0], sizes = [1, 51], strides = [1, 1]} : vector<2x51xf32> to vector<1x51xf32>
    %28 = vector.extract_strided_slice %26 {offsets = [1, 0], sizes = [1, 51], strides = [1, 1]} : vector<2x51xf32> to vector<1x51xf32>
    %29 = arith.addf %27, %28 : vector<1x51xf32>
    %cst_10 = arith.constant 0.000000e+00 : f32
    %30 = vector.broadcast %cst_10 : f32 to vector<1x1xf32>
    %31 = tpu.concatenate %29, %30 in 1 : vector<1x51xf32>, vector<1x1xf32> -> vector<1x52xf32>
    %32 = vector.extract_strided_slice %9 {offsets = [0, 0], sizes = [1, 52], strides = [1, 1]} : vector<2x52xf32> to vector<1x52xf32>
    %33 = vector.extract_strided_slice %9 {offsets = [1, 0], sizes = [1, 52], strides = [1, 1]} : vector<2x52xf32> to vector<1x52xf32>
    %34 = arith.addf %32, %33 : vector<1x52xf32>
    %35 = vector.extract_strided_slice %10 {offsets = [0, 0], sizes = [1, 52], strides = [1, 1]} : vector<2x52xf32> to vector<1x52xf32>
    %36 = vector.extract_strided_slice %10 {offsets = [1, 0], sizes = [1, 52], strides = [1, 1]} : vector<2x52xf32> to vector<1x52xf32>
    %37 = arith.addf %35, %36 : vector<1x52xf32>
    %38 = arith.mulf %34, %5 : vector<1x52xf32>
    %39 = arith.mulf %13, %13 : vector<2x52xf32>
    %40 = vector.extract_strided_slice %39 {offsets = [0, 0], sizes = [1, 52], strides = [1, 1]} : vector<2x52xf32> to vector<1x52xf32>
    %41 = vector.extract_strided_slice %39 {offsets = [1, 0], sizes = [1, 52], strides = [1, 1]} : vector<2x52xf32> to vector<1x52xf32>
    %42 = arith.addf %40, %41 : vector<1x52xf32>
    %43 = math.absf %13 : vector<2x52xf32>
    %44 = vector.extract_strided_slice %43 {offsets = [0, 0], sizes = [1, 52], strides = [1, 1]} : vector<2x52xf32> to vector<1x52xf32>
    %45 = vector.extract_strided_slice %43 {offsets = [1, 0], sizes = [1, 52], strides = [1, 1]} : vector<2x52xf32> to vector<1x52xf32>
    %46 = arith.addf %44, %45 : vector<1x52xf32>
    %47 = math.absf %0 : vector<2x52xf32>
    %48 = vector.extract_strided_slice %47 {offsets = [0, 0], sizes = [1, 52], strides = [1, 1]} : vector<2x52xf32> to vector<1x52xf32>
    %49 = vector.extract_strided_slice %47 {offsets = [1, 0], sizes = [1, 52], strides = [1, 1]} : vector<2x52xf32> to vector<1x52xf32>
    %50 = arith.addf %48, %49 : vector<1x52xf32>
    %51 = arith.mulf %8, %22 : vector<2x52xf32>
    %52 = vector.extract_strided_slice %51 {offsets = [0, 0], sizes = [1, 52], strides = [1, 1]} : vector<2x52xf32> to vector<1x52xf32>
    %53 = vector.extract_strided_slice %51 {offsets = [1, 0], sizes = [1, 52], strides = [1, 1]} : vector<2x52xf32> to vector<1x52xf32>
    %54 = arith.addf %52, %53 : vector<1x52xf32>
    %55 = arith.mulf %17, %21 : vector<2x52xf32>
    %56 = vector.extract_strided_slice %55 {offsets = [0, 0], sizes = [1, 52], strides = [1, 1]} : vector<2x52xf32> to vector<1x52xf32>
    %57 = vector.extract_strided_slice %55 {offsets = [1, 0], sizes = [1, 52], strides = [1, 1]} : vector<2x52xf32> to vector<1x52xf32>
    %58 = arith.addf %56, %57 : vector<1x52xf32>
    %59 = vector.extract_strided_slice %17 {offsets = [0, 0], sizes = [1, 52], strides = [1, 1]} : vector<2x52xf32> to vector<1x52xf32>
    %60 = vector.extract_strided_slice %17 {offsets = [1, 0], sizes = [1, 52], strides = [1, 1]} : vector<2x52xf32> to vector<1x52xf32>
    %61 = arith.addf %59, %60 : vector<1x52xf32>
    %62 = vector.extract_strided_slice %21 {offsets = [0, 0], sizes = [1, 52], strides = [1, 1]} : vector<2x52xf32> to vector<1x52xf32>
    %63 = vector.extract_strided_slice %21 {offsets = [1, 0], sizes = [1, 52], strides = [1, 1]} : vector<2x52xf32> to vector<1x52xf32>
    %64 = arith.addf %62, %63 : vector<1x52xf32>
    %65 = vector.broadcast %6 : vector<1x52xf32> to vector<2x52xf32>
    %66 = arith.mulf %0, %65 : vector<2x52xf32>
    %67 = arith.mulf %0, %0 : vector<2x52xf32>
    %68 = arith.mulf %1, %1 : vector<2x52xf32>
    %69 = arith.mulf %0, %1 : vector<2x52xf32>
    %70 = tpu.concatenate %34, %37, %38, %42, %46, %50, %31, %54, %58, %61, %64, %66, %0, %1, %67, %68 in 0 : vector<1x52xf32>, vector<1x52xf32>, vector<1x52xf32>, vector<1x52xf32>, vector<1x52xf32>, vector<1x52xf32>, vector<1x52xf32>, vector<1x52xf32>, vector<1x52xf32>, vector<1x52xf32>, vector<1x52xf32>, vector<2x52xf32>, vector<2x52xf32>, vector<2x52xf32>, vector<2x52xf32>, vector<2x52xf32> -> vector<21x52xf32>
    %71 = tpu.concatenate %70, %69 in 0 : vector<21x52xf32>, vector<2x52xf32> -> vector<23x52xf32>
    %cst_11 = arith.constant dense<0.000000e+00> : vector<23xf32>
    %72 = vector.multi_reduction <add>, %71, %cst_11 [1] : vector<23x52xf32> to vector<23xf32>
    %73 = vector.shape_cast %72 : vector<23xf32> to vector<23x1xf32>
    %74 = vector.extract_strided_slice %73 {offsets = [0, 0], sizes = [1, 1], strides = [1, 1]} : vector<23x1xf32> to vector<1x1xf32>
    %75 = vector.extract %74[0, 0] : f32 from vector<1x1xf32>
    %cst_12 = arith.constant 1.040000e+02 : f32
    %76 = arith.divf %75, %cst_12 : f32
    %77 = vector.extract_strided_slice %73 {offsets = [1, 0], sizes = [1, 1], strides = [1, 1]} : vector<23x1xf32> to vector<1x1xf32>
    %78 = vector.extract %77[0, 0] : f32 from vector<1x1xf32>
    %cst_13 = arith.constant 1.040000e+02 : f32
    %79 = arith.divf %78, %cst_13 : f32
    %80 = vector.extract_strided_slice %73 {offsets = [2, 0], sizes = [1, 1], strides = [1, 1]} : vector<23x1xf32> to vector<1x1xf32>
    %81 = vector.extract %80[0, 0] : f32 from vector<1x1xf32>
    %82 = vector.extract_strided_slice %73 {offsets = [3, 0], sizes = [1, 1], strides = [1, 1]} : vector<23x1xf32> to vector<1x1xf32>
    %83 = vector.extract %82[0, 0] : f32 from vector<1x1xf32>
    %cst_14 = arith.constant 1.040000e+02 : f32
    %84 = arith.divf %83, %cst_14 : f32
    %85 = vector.extract_strided_slice %73 {offsets = [4, 0], sizes = [1, 1], strides = [1, 1]} : vector<23x1xf32> to vector<1x1xf32>
    %86 = vector.extract %85[0, 0] : f32 from vector<1x1xf32>
    %cst_15 = arith.constant 1.040000e+02 : f32
    %87 = arith.divf %86, %cst_15 : f32
    %88 = vector.extract_strided_slice %73 {offsets = [5, 0], sizes = [1, 1], strides = [1, 1]} : vector<23x1xf32> to vector<1x1xf32>
    %89 = vector.extract %88[0, 0] : f32 from vector<1x1xf32>
    %cst_16 = arith.constant 1.040000e+02 : f32
    %90 = arith.divf %89, %cst_16 : f32
    %91 = vector.extract_strided_slice %73 {offsets = [6, 0], sizes = [1, 1], strides = [1, 1]} : vector<23x1xf32> to vector<1x1xf32>
    %92 = vector.extract %91[0, 0] : f32 from vector<1x1xf32>
    %cst_17 = arith.constant 1.020000e+02 : f32
    %93 = arith.divf %92, %cst_17 : f32
    %94 = vector.extract_strided_slice %73 {offsets = [7, 0], sizes = [1, 1], strides = [1, 1]} : vector<23x1xf32> to vector<1x1xf32>
    %95 = vector.extract %94[0, 0] : f32 from vector<1x1xf32>
    %cst_18 = arith.constant 2.720000e+02 : f32
    %96 = arith.divf %95, %cst_18 : f32
    %cst_19 = arith.constant 0.000000e+00 : f32
    %97 = arith.maximumf %96, %cst_19 : f32
    %98 = vector.extract_strided_slice %73 {offsets = [8, 0], sizes = [1, 1], strides = [1, 1]} : vector<23x1xf32> to vector<1x1xf32>
    %99 = vector.extract %98[0, 0] : f32 from vector<1x1xf32>
    %100 = vector.extract_strided_slice %73 {offsets = [9, 0], sizes = [1, 1], strides = [1, 1]} : vector<23x1xf32> to vector<1x1xf32>
    %101 = vector.extract %100[0, 0] : f32 from vector<1x1xf32>
    %102 = arith.subf %101, %99 : f32
    %103 = vector.extract_strided_slice %73 {offsets = [10, 0], sizes = [1, 1], strides = [1, 1]} : vector<23x1xf32> to vector<1x1xf32>
    %104 = vector.extract %103[0, 0] : f32 from vector<1x1xf32>
    %105 = arith.subf %104, %99 : f32
    %106 = vector.extract_strided_slice %73 {offsets = [11, 0], sizes = [1, 1], strides = [1, 1]} : vector<23x1xf32> to vector<1x1xf32>
    %107 = vector.extract %106[0, 0] : f32 from vector<1x1xf32>
    %108 = vector.extract_strided_slice %4 {offsets = [0, 0], sizes = [1, 1], strides = [1, 1]} : vector<1x52xf32> to vector<1x1xf32>
    %109 = vector.extract %108[0, 0] : f32 from vector<1x1xf32>
    %110 = arith.mulf %107, %107 : f32
    %cst_20 = arith.constant 0.000000e+00 : f32
    %111 = arith.addf %cst_20, %110 : f32
    %112 = arith.mulf %109, %109 : f32
    %cst_21 = arith.constant 0.000000e+00 : f32
    %113 = arith.addf %cst_21, %112 : f32
    %114 = arith.mulf %107, %109 : f32
    %cst_22 = arith.constant 0.000000e+00 : f32
    %115 = arith.addf %cst_22, %114 : f32
    %116 = vector.extract_strided_slice %73 {offsets = [12, 0], sizes = [1, 1], strides = [1, 1]} : vector<23x1xf32> to vector<1x1xf32>
    %117 = vector.extract %116[0, 0] : f32 from vector<1x1xf32>
    %118 = vector.extract_strided_slice %4 {offsets = [0, 1], sizes = [1, 1], strides = [1, 1]} : vector<1x52xf32> to vector<1x1xf32>
    %119 = vector.extract %118[0, 0] : f32 from vector<1x1xf32>
    %120 = arith.mulf %117, %117 : f32
    %121 = arith.addf %111, %120 : f32
    %122 = arith.mulf %119, %119 : f32
    %123 = arith.addf %113, %122 : f32
    %124 = arith.mulf %117, %119 : f32
    %125 = arith.addf %115, %124 : f32
    %cst_23 = arith.constant 1.000000e-24 : f32
    %126 = arith.maximumf %121, %cst_23 : f32
    %127 = math.rsqrt %126 : f32
    %cst_24 = arith.constant 1.000000e-24 : f32
    %128 = arith.maximumf %123, %cst_24 : f32
    %129 = math.rsqrt %128 : f32
    %130 = arith.mulf %121, %127 : f32
    %131 = arith.mulf %130, %127 : f32
    %132 = arith.mulf %123, %129 : f32
    %133 = arith.mulf %132, %129 : f32
    %134 = arith.mulf %125, %127 : f32
    %135 = arith.mulf %134, %129 : f32
    %cst_25 = arith.constant 1.000000e-16 : f32
    %136 = arith.maximumf %131, %cst_25 : f32
    %137 = math.rsqrt %136 : f32
    %138 = arith.mulf %135, %137 : f32
    %cst_26 = arith.constant 1.000000e-16 : f32
    %139 = arith.maximumf %133, %cst_26 : f32
    %140 = math.rsqrt %139 : f32
    %141 = arith.mulf %138, %140 : f32
    %cst_27 = arith.constant 1.000000e+00 : f32
    %142 = arith.subf %cst_27, %141 : f32
    %cst_28 = arith.constant 5.000000e-01 : f32
    %143 = arith.mulf %cst_28, %142 : f32
    %144 = arith.addf %81, %143 : f32
    %cst_29 = arith.constant 1.000000e+00 : f32
    %145 = arith.mulf %cst_29, %76 : f32
    %cst_30 = arith.constant 1.000000e-01 : f32
    %146 = arith.mulf %cst_30, %79 : f32
    %147 = arith.addf %145, %146 : f32
    %cst_31 = arith.constant 5.000000e-01 : f32
    %148 = arith.mulf %cst_31, %144 : f32
    %149 = arith.addf %147, %148 : f32
    %cst_32 = arith.constant 2.000000e-01 : f32
    %150 = arith.mulf %cst_32, %84 : f32
    %151 = arith.addf %149, %150 : f32
    %cst_33 = arith.constant 5.000000e-02 : f32
    %152 = arith.mulf %cst_33, %87 : f32
    %153 = arith.addf %151, %152 : f32
    %cst_34 = arith.constant 0.00999999977 : f32
    %154 = arith.mulf %cst_34, %90 : f32
    %155 = arith.addf %153, %154 : f32
    %cst_35 = arith.constant 1.000000e-01 : f32
    %156 = arith.mulf %cst_35, %93 : f32
    %157 = arith.addf %155, %156 : f32
    %cst_36 = arith.constant 3.000000e-01 : f32
    %158 = arith.mulf %cst_36, %97 : f32
    %159 = arith.addf %157, %158 : f32
    %160 = math.sqrt %76 : f32
    %161 = vector.extract_strided_slice %73 {offsets = [13, 0], sizes = [1, 1], strides = [1, 1]} : vector<23x1xf32> to vector<1x1xf32>
    %162 = vector.extract %161[0, 0] : f32 from vector<1x1xf32>
    %163 = vector.extract_strided_slice %73 {offsets = [15, 0], sizes = [1, 1], strides = [1, 1]} : vector<23x1xf32> to vector<1x1xf32>
    %164 = vector.extract %163[0, 0] : f32 from vector<1x1xf32>
    %165 = vector.extract_strided_slice %73 {offsets = [17, 0], sizes = [1, 1], strides = [1, 1]} : vector<23x1xf32> to vector<1x1xf32>
    %166 = vector.extract %165[0, 0] : f32 from vector<1x1xf32>
    %167 = vector.extract_strided_slice %73 {offsets = [19, 0], sizes = [1, 1], strides = [1, 1]} : vector<23x1xf32> to vector<1x1xf32>
    %168 = vector.extract %167[0, 0] : f32 from vector<1x1xf32>
    %169 = vector.extract_strided_slice %73 {offsets = [21, 0], sizes = [1, 1], strides = [1, 1]} : vector<23x1xf32> to vector<1x1xf32>
    %170 = vector.extract %169[0, 0] : f32 from vector<1x1xf32>
    %171 = arith.mulf %162, %164 : f32
    %cst_37 = arith.constant 5.200000e+01 : f32
    %172 = arith.divf %171, %cst_37 : f32
    %173 = arith.subf %170, %172 : f32
    %174 = arith.mulf %162, %162 : f32
    %cst_38 = arith.constant 5.200000e+01 : f32
    %175 = arith.divf %174, %cst_38 : f32
    %176 = arith.subf %166, %175 : f32
    %177 = arith.mulf %164, %164 : f32
    %cst_39 = arith.constant 5.200000e+01 : f32
    %178 = arith.divf %177, %cst_39 : f32
    %179 = arith.subf %168, %178 : f32
    %180 = arith.mulf %176, %179 : f32
    %181 = math.rsqrt %180 : f32
    %182 = arith.mulf %173, %181 : f32
    %183 = arith.cmpf oeq, %182, %182 : f32
    %184 = arith.extui %183 : i1 to i32
    %185 = arith.sitofp %184 : i32 to f32
    %cst_40 = arith.constant 0.000000e+00 : f32
    %186 = arith.addf %cst_40, %185 : f32
    %cst_41 = arith.constant 0.000000e+00 : f32
    %187 = arith.select %183, %182, %cst_41 : f32
    %cst_42 = arith.constant 0.000000e+00 : f32
    %188 = arith.addf %cst_42, %187 : f32
    %189 = vector.extract_strided_slice %73 {offsets = [14, 0], sizes = [1, 1], strides = [1, 1]} : vector<23x1xf32> to vector<1x1xf32>
    %190 = vector.extract %189[0, 0] : f32 from vector<1x1xf32>
    %191 = vector.extract_strided_slice %73 {offsets = [16, 0], sizes = [1, 1], strides = [1, 1]} : vector<23x1xf32> to vector<1x1xf32>
    %192 = vector.extract %191[0, 0] : f32 from vector<1x1xf32>
    %193 = vector.extract_strided_slice %73 {offsets = [18, 0], sizes = [1, 1], strides = [1, 1]} : vector<23x1xf32> to vector<1x1xf32>
    %194 = vector.extract %193[0, 0] : f32 from vector<1x1xf32>
    %195 = vector.extract_strided_slice %73 {offsets = [20, 0], sizes = [1, 1], strides = [1, 1]} : vector<23x1xf32> to vector<1x1xf32>
    %196 = vector.extract %195[0, 0] : f32 from vector<1x1xf32>
    %197 = vector.extract_strided_slice %73 {offsets = [22, 0], sizes = [1, 1], strides = [1, 1]} : vector<23x1xf32> to vector<1x1xf32>
    %198 = vector.extract %197[0, 0] : f32 from vector<1x1xf32>
    %199 = arith.mulf %190, %192 : f32
    %cst_43 = arith.constant 5.200000e+01 : f32
    %200 = arith.divf %199, %cst_43 : f32
    %201 = arith.subf %198, %200 : f32
    %202 = arith.mulf %190, %190 : f32
    %cst_44 = arith.constant 5.200000e+01 : f32
    %203 = arith.divf %202, %cst_44 : f32
    %204 = arith.subf %194, %203 : f32
    %205 = arith.mulf %192, %192 : f32
    %cst_45 = arith.constant 5.200000e+01 : f32
    %206 = arith.divf %205, %cst_45 : f32
    %207 = arith.subf %196, %206 : f32
    %208 = arith.mulf %204, %207 : f32
    %209 = math.rsqrt %208 : f32
    %210 = arith.mulf %201, %209 : f32
    %211 = arith.cmpf oeq, %210, %210 : f32
    %212 = arith.extui %211 : i1 to i32
    %213 = arith.sitofp %212 : i32 to f32
    %214 = arith.addf %186, %213 : f32
    %cst_46 = arith.constant 0.000000e+00 : f32
    %215 = arith.select %211, %210, %cst_46 : f32
    %216 = arith.addf %188, %215 : f32
    %cst_47 = arith.constant 0.000000e+00 : f32
    %217 = arith.cmpf ogt, %214, %cst_47 : f32
    %cst_48 = arith.constant 1.000000e+00 : f32
    %218 = arith.maximumf %214, %cst_48 : f32
    %219 = arith.divf %216, %218 : f32
    %cst_49 = arith.constant 0.000000e+00 : f32
    %220 = arith.select %217, %219, %cst_49 : f32
    %221 = arith.addf %99, %102 : f32
    %cst_50 = arith.constant 9.99999993E-9 : f32
    %222 = arith.addf %221, %cst_50 : f32
    %223 = arith.divf %99, %222 : f32
    %224 = arith.addf %99, %105 : f32
    %cst_51 = arith.constant 9.99999993E-9 : f32
    %225 = arith.addf %224, %cst_51 : f32
    %226 = arith.divf %99, %225 : f32
    %cst_52 = arith.constant 2.000000e+00 : f32
    %227 = arith.mulf %cst_52, %223 : f32
    %228 = arith.mulf %227, %226 : f32
    %229 = arith.addf %223, %226 : f32
    %cst_53 = arith.constant 9.99999993E-9 : f32
    %230 = arith.addf %229, %cst_53 : f32
    %231 = arith.divf %228, %230 : f32
    %232 = vector.extract_strided_slice %0 {offsets = [0, 0], sizes = [1, 52], strides = [1, 1]} : vector<2x52xf32> to vector<1x52xf32>
    %233 = vector.extract_strided_slice %0 {offsets = [1, 0], sizes = [1, 52], strides = [1, 1]} : vector<2x52xf32> to vector<1x52xf32>
    %234 = arith.maximumf %232, %233 : vector<1x52xf32>
    %cst_54 = arith.constant 0.000000e+00 : f32
    %235 = vector.broadcast %cst_54 : f32 to vector<2x52xf32>
    %236 = arith.subf %235, %0 : vector<2x52xf32>
    %237 = vector.extract_strided_slice %236 {offsets = [0, 0], sizes = [1, 52], strides = [1, 1]} : vector<2x52xf32> to vector<1x52xf32>
    %238 = vector.extract_strided_slice %236 {offsets = [1, 0], sizes = [1, 52], strides = [1, 1]} : vector<2x52xf32> to vector<1x52xf32>
    %239 = arith.maximumf %237, %238 : vector<1x52xf32>
    %240 = vector.extract_strided_slice %1 {offsets = [0, 0], sizes = [1, 52], strides = [1, 1]} : vector<2x52xf32> to vector<1x52xf32>
    %241 = vector.extract_strided_slice %1 {offsets = [1, 0], sizes = [1, 52], strides = [1, 1]} : vector<2x52xf32> to vector<1x52xf32>
    %242 = arith.maximumf %240, %241 : vector<1x52xf32>
    %cst_55 = arith.constant 0.000000e+00 : f32
    %243 = vector.broadcast %cst_55 : f32 to vector<2x52xf32>
    %244 = arith.subf %243, %1 : vector<2x52xf32>
    %245 = vector.extract_strided_slice %244 {offsets = [0, 0], sizes = [1, 52], strides = [1, 1]} : vector<2x52xf32> to vector<1x52xf32>
    %246 = vector.extract_strided_slice %244 {offsets = [1, 0], sizes = [1, 52], strides = [1, 1]} : vector<2x52xf32> to vector<1x52xf32>
    %247 = arith.maximumf %245, %246 : vector<1x52xf32>
    %248 = tpu.concatenate %234, %239, %242, %247 in 0 : vector<1x52xf32>, vector<1x52xf32>, vector<1x52xf32>, vector<1x52xf32> -> vector<4x52xf32>
    %cst_56 = arith.constant dense<0xFF800000> : vector<4xf32>
    %249 = vector.multi_reduction <maximumf>, %248, %cst_56 [1] : vector<4x52xf32> to vector<4xf32>
    %250 = vector.shape_cast %249 : vector<4xf32> to vector<4x1xf32>
    %251 = vector.extract_strided_slice %250 {offsets = [0, 0], sizes = [1, 1], strides = [1, 1]} : vector<4x1xf32> to vector<1x1xf32>
    %252 = vector.extract %251[0, 0] : f32 from vector<1x1xf32>
    %253 = vector.extract_strided_slice %250 {offsets = [1, 0], sizes = [1, 1], strides = [1, 1]} : vector<4x1xf32> to vector<1x1xf32>
    %254 = vector.extract %253[0, 0] : f32 from vector<1x1xf32>
    %255 = arith.addf %252, %254 : f32
    %256 = vector.extract_strided_slice %250 {offsets = [2, 0], sizes = [1, 1], strides = [1, 1]} : vector<4x1xf32> to vector<1x1xf32>
    %257 = vector.extract %256[0, 0] : f32 from vector<1x1xf32>
    %258 = vector.extract_strided_slice %250 {offsets = [3, 0], sizes = [1, 1], strides = [1, 1]} : vector<4x1xf32> to vector<1x1xf32>
    %259 = vector.extract %258[0, 0] : f32 from vector<1x1xf32>
    %260 = arith.addf %257, %259 : f32
    %cst_57 = arith.constant 9.99999993E-9 : f32
    %261 = arith.addf %260, %cst_57 : f32
    %262 = arith.divf %255, %261 : f32
    %c0_58 = arith.constant 0 : index
    %263 = memref.load %arg1[%c0_58] : memref<16xf32, #tpu.memory_space<smem>>
    memref.store %76, %arg1[%c0_58] : memref<16xf32, #tpu.memory_space<smem>>
    %c1 = arith.constant 1 : index
    %264 = memref.load %arg1[%c1] : memref<16xf32, #tpu.memory_space<smem>>
    memref.store %79, %arg1[%c1] : memref<16xf32, #tpu.memory_space<smem>>
    %c2_59 = arith.constant 2 : index
    %265 = memref.load %arg1[%c2_59] : memref<16xf32, #tpu.memory_space<smem>>
    memref.store %144, %arg1[%c2_59] : memref<16xf32, #tpu.memory_space<smem>>
    %c3 = arith.constant 3 : index
    %266 = memref.load %arg1[%c3] : memref<16xf32, #tpu.memory_space<smem>>
    memref.store %84, %arg1[%c3] : memref<16xf32, #tpu.memory_space<smem>>
    %c4_60 = arith.constant 4 : index
    %267 = memref.load %arg1[%c4_60] : memref<16xf32, #tpu.memory_space<smem>>
    memref.store %87, %arg1[%c4_60] : memref<16xf32, #tpu.memory_space<smem>>
    %c5 = arith.constant 5 : index
    %268 = memref.load %arg1[%c5] : memref<16xf32, #tpu.memory_space<smem>>
    memref.store %90, %arg1[%c5] : memref<16xf32, #tpu.memory_space<smem>>
    %c6_61 = arith.constant 6 : index
    %269 = memref.load %arg1[%c6_61] : memref<16xf32, #tpu.memory_space<smem>>
    memref.store %93, %arg1[%c6_61] : memref<16xf32, #tpu.memory_space<smem>>
    %c7 = arith.constant 7 : index
    %270 = memref.load %arg1[%c7] : memref<16xf32, #tpu.memory_space<smem>>
    memref.store %97, %arg1[%c7] : memref<16xf32, #tpu.memory_space<smem>>
    %c8_62 = arith.constant 8 : index
    %271 = memref.load %arg1[%c8_62] : memref<16xf32, #tpu.memory_space<smem>>
    memref.store %159, %arg1[%c8_62] : memref<16xf32, #tpu.memory_space<smem>>
    %c9_63 = arith.constant 9 : index
    %272 = memref.load %arg1[%c9_63] : memref<16xf32, #tpu.memory_space<smem>>
    memref.store %79, %arg1[%c9_63] : memref<16xf32, #tpu.memory_space<smem>>
    %c10_64 = arith.constant 10 : index
    %273 = memref.load %arg1[%c10_64] : memref<16xf32, #tpu.memory_space<smem>>
    memref.store %160, %arg1[%c10_64] : memref<16xf32, #tpu.memory_space<smem>>
    %c11 = arith.constant 11 : index
    %274 = memref.load %arg1[%c11] : memref<16xf32, #tpu.memory_space<smem>>
    memref.store %220, %arg1[%c11] : memref<16xf32, #tpu.memory_space<smem>>
    %c12 = arith.constant 12 : index
    %275 = memref.load %arg1[%c12] : memref<16xf32, #tpu.memory_space<smem>>
    memref.store %223, %arg1[%c12] : memref<16xf32, #tpu.memory_space<smem>>
    %c13 = arith.constant 13 : index
    %276 = memref.load %arg1[%c13] : memref<16xf32, #tpu.memory_space<smem>>
    memref.store %226, %arg1[%c13] : memref<16xf32, #tpu.memory_space<smem>>
    %c14 = arith.constant 14 : index
    %277 = memref.load %arg1[%c14] : memref<16xf32, #tpu.memory_space<smem>>
    memref.store %231, %arg1[%c14] : memref<16xf32, #tpu.memory_space<smem>>
    %c15 = arith.constant 15 : index
    %278 = memref.load %arg1[%c15] : memref<16xf32, #tpu.memory_space<smem>>
    memref.store %262, %arg1[%c15] : memref<16xf32, #tpu.memory_space<smem>>
    return
  }
}

</mosaic_0001>

<llo_original>
// kernel: koemorph_loss.1
$region0: #{koemorph_loss.1}
  #allocation0 [shape = 'u32[]', space=smem, size = 0x4, offset = 0x4, fixed_abs, tag = 'smem constant byte address 0x4 - core index']
  #allocation1 [shape = 'u32[144,128]{1,0:T(1,128)}', space=vmem, size = 0x12000, scoped, tag = 'internal scratch']
  %s0 = inlined_call_operand.vmem [shape: f32[68,52], index: 0, kind: input, shape index: {}]
  %s1 = inlined_call_operand.vmem [shape: f32[16], index: 1, kind: output, shape index: {}]
  %s2 = sld [smem:[#allocation0]]
  $region14: #{koemorph_loss.1} parent=0
    _
  %s4 = ssub.s32 1, %s2
  %s5 = scalar_select 0, %s4, %s2
  $region1: #{koemorph_loss.1} parent=0
    #allocation2 [shape = 'u8[512]{0}', space=smem, size = 0x200, scoped, tag = 'output window, operand 0, single buffered']
    #allocation3 [shape = 's32[1]{0}', space=sflag, size = 0x4, scoped, tag = 'scoped memory for koemorph_loss.1']
    %6 = vsyncpa [#allocation3], 0
    // Predicated region
    $region2: #{koemorph_loss.1} parent=1 // pred_check
      _
    $region3: #{koemorph_loss.1} parent=1 // pred_check_branch
      %8 = sbr.rel (0) target = $region5
    $region4: #{koemorph_loss.1} parent=1 // pred_region
      _
    $region5: #{koemorph_loss.1} parent=1 // pred_fallthru
      _
    %v9 = vld [vmem:[%s0] sm:$0x3]
    %v10 = vld [vmem:[%s0 + $0x2] sm:$0x3]
    %v11 = vld [vmem:[%s0 + $0x4] sm:$0x3]
    %v12 = vld [vmem:[%s0 + $0x6] sm:$0x3]
    %v13 = vld [vmem:[%s0 + $0x8] sm:$0x1]
    %v14 = vld [vmem:[%s0 + $0x9] sm:$0x1]
    %v15 = vld [vmem:[%s0 + $0xa] sm:$0x1]
    %v16 = vld [vmem:[%s0 + $0x10] sm:$0xff]
    %v17 = vld [vmem:[%s0 + $0x18] sm:$0xff]
    %v18 = vld [vmem:[%s0 + $0x20] sm:$0xff]
    %v19 = vld [vmem:[%s0 + $0x28] sm:$0xff]
    %v20 = vld [vmem:[%s0 + $0x30] sm:$0xff]
    %v21 = vld [vmem:[%s0 + $0x38] sm:$0xff]
    %v22 = vld [vmem:[%s0 + $0x40] sm:$0xf]
    %v23 = vsub.f32 %v9, %v10
    %v24 = vmul.f32 %v23, %v23
    %v25 = vand.u32 2147483647, %v23
    %v26 = vsub.f32 %v9, %v11
    %v27 = vsub.f32 %v10, %v12
    %v28 = vsub.f32 %v26, %v27
    %vm29 = vcmp.gt.f32.partialorder %v9, 0.1
    %v30 = vsel %vm29, 1, 0
    %v31 = vcvt.s32.f32 %v30
    %vm32 = vcmp.gt.f32.partialorder %v10, 0.1
    %v33 = vsel %vm32, 1, 0
    %v34 = vcvt.s32.f32 %v33
    %vm35 = vcmask 424960
    %v37 = vsel %vm35, %v23, 0
    %vm39 = vcmask 1043456
    %v41 = vsel %vm39, %v22, 0
    %43 = vmatprep.subr.mxu0 0.0
    %44 = vmatpush1.msra.mxu0 %v16
    %45 = vmatprep.subr.mxu0 0.0
    %46 = vmatpush1.msra.mxu0 %v17
    %47 = vmatprep.subr.mxu0 0.0
    %48 = vmatpush1.msra.mxu0 %v18
    %49 = vmatprep.subr.mxu0 0.0
    %50 = vmatpush1.msra.mxu0 %v19
    %51 = vmatprep.subr.mxu0 0.0
    %52 = vmatpush1.msra.mxu0 %v20
    %53 = vmatprep.subr.mxu0 0.0
    %54 = vmatpush1.msra.mxu0 %v21
    %55 = vmatprep.subr.mxu0 0.0
    %56 = vmatpush1.msra.mxu0 %v41
    %57 = vmatprep.subr.mxu0 0.0
    %58 = vmatpush1.msra.mxu0 0.0
    %59 = vmatprep.subr.mxu0 0.0
    %60 = vmatpush1.msra.mxu0 0.0
    %61 = vmatprep.subr.mxu0 0.0
    %62 = vmatpush1.msra.mxu0 0.0
    %63 = vmatprep.subr.mxu0 0.0
    %64 = vmatpush1.msra.mxu0 0.0
    %65 = vmatprep.subr.mxu0 0.0
    %66 = vmatpush1.msra.mxu0 0.0
    %67 = vmatprep.subr.mxu0 0.0
    %68 = vmatpush1.msra.mxu0 0.0
    %69 = vmatprep.subr.mxu0 0.0
    %70 = vmatpush1.msra.mxu0 0.0
    %71 = vmatprep.subr.mxu0 0.0
    %72 = vmatpush1.msra.mxu0 0.0
    %73 = vmatprep.subr.mxu0 0.0
    %74 = vmatpush1.msra.mxu0 0.0
    %75 = vmatprep.subr.mxu0 0.0
    %76 = vmatpush1.msra.mxu0 0.0
    %77 = vmatprep.subr.mxu0 0.0
    %78 = vmatpush1.msra.mxu0 0.0
    %79 = vmatprep.subr.mxu0 0.0
    %80 = vmatpush1.msra.mxu0 0.0
    %81 = vmatprep.subr.mxu0 0.0
    %82 = vmatpush1.msra.mxu0 0.0
    %83 = vmatprep.subr.mxu0 0.0
    %84 = vmatpush1.msra.mxu0 0.0
    %85 = vmatprep.subr.mxu0 0.0
    %86 = vmatpush1.msra.mxu0 0.0
    %87 = vmatprep.subr.mxu0 0.0
    %88 = vmatpush1.msra.mxu0 0.0
    %89 = vmatprep.subr.mxu0 0.0
    %90 = vmatpush1.msra.mxu0 0.0
    %91 = vmatprep.subr.mxu0 0.0
    %92 = vmatpush1.msra.mxu0 0.0
    %93 = vmatprep.subr.mxu0 0.0
    %94 = vmatpush1.msra.mxu0 0.0
    %95 = vmatprep.subr.mxu0 0.0
    %96 = vmatpush1.msra.mxu0 0.0
    %97 = vmatprep.subr.mxu0 0.0
    %98 = vmatpush1.msra.mxu0 0.0
    %99 = vmatprep.subr.mxu0 0.0
    %100 = vmatpush1.msra.mxu0 0.0
    %101 = vmatprep.subr.mxu0 0.0
    %102 = vmatpush1.msra.mxu0 0.0
    %103 = vmatprep.subr.mxu0 0.0
    %104 = vmatpush1.msra.mxu0 0.0
    %105 = vmatprep.subr.mxu0 0.0
    %106 = vmatpush1.msra.mxu0 0.0
    %107 = vmatprep.mubr.f32.mxu0 0.0
    %108 = vmatmul.mubr.f32.gmra.mrb[0].mxu0 %v37
    %v109 = vpop.f32.mrb[0].mxu0
    %v110 = vadd.f32 0.0, %v109
    %v111 = vpop.f32.mrb[0].mxu0
    %112 = vdwg.mxu0
    %114 = vrot.lane.b32.xlu0 %v9, 1
    %v115 = vpop.permute.xlu0 %114
    %v117 = vsub.f32 %v9, %v115
    %v118 = vand.u32 2147483647, %v117
    %v120 = vrot.slane %v118, 1
    %v122 = vadd.f32 %v118, %v120
    %124 = vrot.lane.b32.xlu0 %v122, 127
    %v125 = vpop.permute.xlu0 %124
    %vm127 = vcmask 416768
    %v128 = vsel %vm127, %v125, 0.0
    %v130 = vrot.slane %v24, 1
    %v132 = vadd.f32 %v24, %v130
    %v134 = vrot.slane %v25, 1
    %v136 = vadd.f32 %v25, %v134
    %v137 = vmul.f32 %v132, %v14
    %v138 = vmul.f32 %v28, %v28
    %v140 = vrot.slane %v138, 1
    %v142 = vadd.f32 %v138, %v140
    %v143 = vand.u32 2147483647, %v28
    %v145 = vrot.slane %v143, 1
    %v147 = vadd.f32 %v143, %v145
    %v148 = vand.u32 2147483647, %v9
    %v150 = vrot.slane %v148, 1
    %v152 = vadd.f32 %v148, %v150
    %v153 = vmul.f32 %v23, %v110
    %v155 = vrot.slane %v153, 1
    %v157 = vadd.f32 %v153, %v155
    %v158 = vmul.f32 %v31, %v34
    %v160 = vrot.slane %v158, 1
    %v162 = vadd.f32 %v158, %v160
    %v164 = vrot.slane %v31, 1
    %v166 = vadd.f32 %v31, %v164
    %v168 = vrot.slane %v34, 1
    %v170 = vadd.f32 %v34, %v168
    %v171 = vlaneseq
    %v172 = vshrl.u32 %v171, 7
    %v173 = vsub.s32 0, %v172
    %v174 = vrot.slane %v15, %v173
    %v175 = vmul.f32 %v9, %v174
    %v176 = vmul.f32 %v9, %v9
    %v177 = vmul.f32 %v10, %v10
    %v178 = vmul.f32 %v9, %v10
    %v180 = vrot.slane %v136, 7
    %v183 = vrot.slane %v137, 6
    %v186 = vrot.slane %v142, 5
    %v189 = vrot.slane %v147, 4
    %v192 = vrot.slane %v152, 3
    %v195 = vrot.slane %v128, 2
    %v198 = vrot.slane %v157, 1
    %v201 = vrot.slane %v166, 7
    %v204 = vrot.slane %v170, 6
    %v207 = vrot.slane %v175, 5
    %v209 = vrot.slane %v9, 3
    %v212 = vrot.slane %v10, 1
    %v215 = vrot.slane %v176, 7
    %v218 = vrot.slane %v177, 5
    %vm220 = vcmask 1040384
    %v221 = vsel %vm220, %v132, %v180
    %vm222 = vcmask 1041408
    %v223 = vsel %vm222, %v221, %v183
    %vm224 = vcmask 1042432
    %v225 = vsel %vm224, %v223, %v186
    %v226 = vsel %vm39, %v225, %v189
    %vm227 = vcmask 1044480
    %v228 = vsel %vm227, %v226, %v192
    %vm229 = vcmask 1045504
    %v230 = vsel %vm229, %v228, %v195
    %vm231 = vcmask 1046528
    %v232 = vsel %vm231, %v230, %v198
    %v233 = vsel %vm220, %v162, %v201
    %v234 = vsel %vm222, %v233, %v204
    %v235 = vsel %vm224, %v234, %v207
    %v236 = vsel %vm227, %v235, %v209
    %v237 = vsel %vm231, %v236, %v212
    %v238 = vsel %vm220, %v212, %v215
    %v239 = vsel %vm224, %v238, %v218
    %v241 = vrot.slane %v178, 3
    %v243 = vsel %vm227, %v239, %v241
    %v244 = vsel %vm35, %v232, 0.0
    %245 = vadd.xlane.f32.xlu0 %v244
    %v246 = vpop.xlane.xlu0 %245
    %v247 = vsel %vm35, %v237, 0.0
    %248 = vadd.xlane.f32.xlu0 %v247
    %v249 = vpop.xlane.xlu0 %248
    %vm250 = vcmask 423936
    %v251 = vsel %vm250, %v243, 0.0
    %252 = vadd.xlane.f32.xlu0 %v251
    %v253 = vpop.xlane.xlu0 %252
    %s254 = vtos %v246
    %v255 = vrcp.pop 104.0
    %s256 = vtos %v255
    %s257 = smul.f32 %s254, %s256
    %v258 = vrot.slane %v246, 1
    %s259 = vtos %v258
    %v260 = vrcp.pop 104.0
    %s261 = vtos %v260
    %s262 = smul.f32 %s259, %s261
    %v263 = vrot.slane %v246, 2
    %s264 = vtos %v263
    %v265 = vrot.slane %v246, 3
    %s266 = vtos %v265
    %v267 = vrcp.pop 104.0
    %s268 = vtos %v267
    %s269 = smul.f32 %s266, %s268
    %v270 = vrot.slane %v246, 4
    %s271 = vtos %v270
    %v272 = vrcp.pop 104.0
    %s273 = vtos %v272
    %s274 = smul.f32 %s271, %s273
    %v275 = vrot.slane %v246, 5
    %s276 = vtos %v275
    %v277 = vrcp.pop 104.0
    %s278 = vtos %v277
    %s279 = smul.f32 %s276, %s278
    %v280 = vrot.slane %v246, 6
    %s281 = vtos %v280
    %v282 = vrcp.pop 102.0
    %s283 = vtos %v282
    %s284 = smul.f32 %s281, %s283
    %v285 = vrot.slane %v246, 7
    %s286 = vtos %v285
    %v287 = vrcp.pop 272.0
    %s288 = vtos %v287
    %s289 = smul.f32 %s286, %s288
    %s290 = smax.f32 %s289, 0.0
    %s291 = vtos %v249
    %v292 = vrot.slane %v249, 1
    %s293 = vtos %v292
    %s294 = ssub.f32 %s293, %s291
    %v295 = vrot.slane %v249, 2
    %s296 = vtos %v295
    %s297 = ssub.f32 %s296, %s291
    %v298 = vrot.slane %v249, 3
    %s299 = vtos %v298
    %s300 = vtos %v13
    %s301 = smul.f32 %s299, %s299
    %s302 = sadd.f32 %s301, 0.0
    %s303 = smul.f32 %s300, %s300
    %s304 = sadd.f32 %s303, 0.0
    %s305 = smul.f32 %s299, %s300
    %s306 = sadd.f32 %s305, 0.0
    %v307 = vrot.slane %v249, 4
    %s308 = vtos %v307
    %309 = vrot.lane.b32.xlu0 %v13, 127
    %v310 = vpop.permute.xlu0 %309
    %s311 = vtos %v310
    %s312 = smul.f32 %s308, %s308
    %s313 = sadd.f32 %s302, %s312
    %s314 = smul.f32 %s311, %s311
    %s315 = sadd.f32 %s304, %s314
    %s316 = smul.f32 %s308, %s311
    %s317 = sadd.f32 %s306, %s316
    %s318 = smax.f32 %s313, 1e-24
    %v319 = vstv %s318
    %v320 = vrsqrt.pop %v319
    %s321 = vtos %v320
    %s322 = smax.f32 %s315, 1e-24
    %v323 = vstv %s322
    %v324 = vrsqrt.pop %v323
    %s325 = vtos %v324
    %s326 = smul.f32 %s313, %s321
    %s327 = smul.f32 %s326, %s321
    %s328 = smul.f32 %s315, %s325
    %s329 = smul.f32 %s328, %s325
    %s330 = smul.f32 %s317, %s321
    %s331 = smul.f32 %s330, %s325
    %s332 = smax.f32 %s327, 1e-16
    %v333 = vstv %s332
    %v334 = vrsqrt.pop %v333
    %s335 = vtos %v334
    %s336 = smul.f32 %s331, %s335
    %s337 = smax.f32 %s329, 1e-16
    %v338 = vstv %s337
    %v339 = vrsqrt.pop %v338
    %s340 = vtos %v339
    %s341 = smul.f32 %s336, %s340
    %s342 = ssub.f32 1.0, %s341
    %s343 = smul.f32 %s342, 0.5
    %s344 = sadd.f32 %s264, %s343
    %s345 = smul.f32 %s262, 0.1
    %s346 = sadd.f32 %s257, %s345
    %s347 = smul.f32 %s344, 0.5
    %s348 = sadd.f32 %s346, %s347
    %s349 = smul.f32 %s269, 0.2
    %s350 = sadd.f32 %s348, %s349
    %s351 = smul.f32 %s274, 0.05
    %s352 = sadd.f32 %s350, %s351
    %s353 = smul.f32 %s279, 0.01
    %s354 = sadd.f32 %s352, %s353
    %s355 = smul.f32 %s284, 0.1
    %s356 = sadd.f32 %s354, %s355
    %s357 = smul.f32 %s290, 0.3
    %s358 = sadd.f32 %s356, %s357
    %v359 = vstv %s257
    %v360 = vrsqrt.pop %v359
    %v361 = vmul.f32 %v359, %v360
    %vm362 = vcmp.eq.f32.partialorder %v359, inf
    %v363 = vsel %vm362, %v359, %v361
    %vm364 = vcmp.eq.f32.partialorder %v359, 0.0
    %v365 = vand.u32 %v359, 2147483648
    %v366 = vsel %vm364, %v365, %v363
    %s367 = vtos %v366
    %v368 = vrot.slane %v249, 5
    %s369 = vtos %v368
    %v370 = vrot.slane %v249, 7
    %s371 = vtos %v370
    %v372 = vrot.slane %v253, 1
    %s373 = vtos %v372
    %v374 = vrot.slane %v253, 3
    %s375 = vtos %v374
    %v376 = vrot.slane %v253, 5
    %s377 = vtos %v376
    %s378 = smul.f32 %s369, %s371
    %v379 = vrcp.pop 52.0
    %s380 = vtos %v379
    %s381 = smul.f32 %s378, %s380
    %s382 = ssub.f32 %s377, %s381
    %s383 = smul.f32 %s369, %s369
    %v384 = vrcp.pop 52.0
    %s385 = vtos %v384
    %s386 = smul.f32 %s383, %s385
    %s387 = ssub.f32 %s373, %s386
    %s388 = smul.f32 %s371, %s371
    %v389 = vrcp.pop 52.0
    %s390 = vtos %v389
    %s391 = smul.f32 %s388, %s390
    %s392 = ssub.f32 %s375, %s391
    %s393 = smul.f32 %s387, %s392
    %v394 = vstv %s393
    %v395 = vrsqrt.pop %v394
    %s396 = vtos %v395
    %s397 = smul.f32 %s382, %s396
    %p398 = scmp.eq.f32.partialorder %s397, %s397
    %s399 = scalar_select %p398, 1, 0
    %s400 = scvt.s32.f32 %s399
    %s401 = sadd.f32 %s400, 0.0
    %s402 = scalar_select %p398, %s397, 0.0
    %s403 = sadd.f32 %s402, 0.0
    %v404 = vrot.slane %v249, 6
    %s405 = vtos %v404
    %s406 = vtos %v253
    %v407 = vrot.slane %v253, 2
    %s408 = vtos %v407
    %v409 = vrot.slane %v253, 4
    %s410 = vtos %v409
    %v411 = vrot.slane %v253, 6
    %s412 = vtos %v411
    %s413 = smul.f32 %s405, %s406
    %v414 = vrcp.pop 52.0
    %s415 = vtos %v414
    %s416 = smul.f32 %s413, %s415
    %s417 = ssub.f32 %s412, %s416
    %s418 = smul.f32 %s405, %s405
    %v419 = vrcp.pop 52.0
    %s420 = vtos %v419
    %s421 = smul.f32 %s418, %s420
    %s422 = ssub.f32 %s408, %s421
    %s423 = smul.f32 %s406, %s406
    %v424 = vrcp.pop 52.0
    %s425 = vtos %v424
    %s426 = smul.f32 %s423, %s425
    %s427 = ssub.f32 %s410, %s426
    %s428 = smul.f32 %s422, %s427
    %v429 = vstv %s428
    %v430 = vrsqrt.pop %v429
    %s431 = vtos %v430
    %s432 = smul.f32 %s417, %s431
    %p433 = scmp.eq.f32.partialorder %s432, %s432
    %s434 = scalar_select %p433, 1, 0
    %s435 = scvt.s32.f32 %s434
    %s436 = sadd.f32 %s401, %s435
    %s437 = scalar_select %p433, %s432, 0.0
    %s438 = sadd.f32 %s403, %s437
    %p439 = scmp.gt.f32.partialorder %s436, 0.0
    %s440 = smax.f32 %s436, 1.0
    %v441 = vstv %s440
    %v442 = vrcp.pop %v441
    %s443 = vtos %v442
    %s444 = smul.f32 %s438, %s443
    %s445 = scalar_select %p439, %s444, 0.0
    %s446 = sadd.f32 %s291, %s294
    %s447 = sadd.f32 %s446, 1e-08
    %v448 = vstv %s447
    %v449 = vrcp.pop %v448
    %s450 = vtos %v449
    %s451 = smul.f32 %s291, %s450
    %s452 = sadd.f32 %s291, %s297
    %s453 = sadd.f32 %s452, 1e-08
    %v454 = vstv %s453
    %v455 = vrcp.pop %v454
    %s456 = vtos %v455
    %s457 = smul.f32 %s291, %s456
    %s458 = smul.f32 %s451, 2.0
    %s459 = smul.f32 %s458, %s457
    %s460 = sadd.f32 %s451, %s457
    %s461 = sadd.f32 %s460, 1e-08
    %v462 = vstv %s461
    %v463 = vrcp.pop %v462
    %s464 = vtos %v463
    %s465 = smul.f32 %s459, %s464
    %v466 = vrot.slane %v9, 1
    %v468 = vmax.f32 %v9, %v466
    %v469 = vsub.f32 0.0, %v9
    %v471 = vrot.slane %v469, 1
    %v473 = vmax.f32 %v469, %v471
    %v474 = vmax.f32 %v10, %v212
    %v475 = vsub.f32 0.0, %v10
    %v477 = vrot.slane %v475, 1
    %v479 = vmax.f32 %v475, %v477
    %v481 = vrot.slane %v473, 7
    %v484 = vrot.slane %v474, 6
    %v487 = vrot.slane %v479, 5
    %v489 = vsel %vm220, %v468, %v481
    %v490 = vsel %vm222, %v489, %v484
    %v491 = vsel %vm224, %v490, %v487
    %vm492 = vcmask 420864
    %v493 = vsel %vm492, %v491, -inf
    %494 = vmax.xlane.f32.xlu0 %v493
    %v495 = vpop.xlane.xlu0 %494
    %s496 = vtos %v495
    %v497 = vrot.slane %v495, 1
    %s498 = vtos %v497
    %s499 = sadd.f32 %s496, %s498
    %v500 = vrot.slane %v495, 2
    %s501 = vtos %v500
    %v502 = vrot.slane %v495, 3
    %s503 = vtos %v502
    %s504 = sadd.f32 %s501, %s503
    %s505 = sadd.f32 %s504, 1e-08
    %v506 = vstv %s505
    %v507 = vrcp.pop %v506
    %s508 = vtos %v507
    %s509 = smul.f32 %s499, %s508
    %s510 = scalar_lea.smem [#allocation2], 0
    %511 = sst [smem:[%s510]] %s257
    %s512 = scalar_lea.smem [#allocation2], 1
    %513 = sst [smem:[%s512]] %s262
    %s514 = scalar_lea.smem [#allocation2], 2
    %515 = sst [smem:[%s514]] %s344
    %s516 = scalar_lea.smem [#allocation2], 3
    %517 = sst [smem:[%s516]] %s269
    %s518 = scalar_lea.smem [#allocation2], 4
    %519 = sst [smem:[%s518]] %s274
    %s520 = scalar_lea.smem [#allocation2], 5
    %521 = sst [smem:[%s520]] %s279
    %s522 = scalar_lea.smem [#allocation2], 6
    %523 = sst [smem:[%s522]] %s284
    %s524 = scalar_lea.smem [#allocation2], 7
    %525 = sst [smem:[%s524]] %s290
    %s526 = scalar_lea.smem [#allocation2], 8
    %527 = sst [smem:[%s526]] %s358
    %s528 = scalar_lea.smem [#allocation2], 9
    %529 = sst [smem:[%s528]] %s262
    %s530 = scalar_lea.smem [#allocation2], 10
    %531 = sst [smem:[%s530]] %s367
    %s532 = scalar_lea.smem [#allocation2], 11
    %533 = sst [smem:[%s532]] %s445
    %s534 = scalar_lea.smem [#allocation2], 12
    %535 = sst [smem:[%s534]] %s451
    %s536 = scalar_lea.smem [#allocation2], 13
    %537 = sst [smem:[%s536]] %s457
    %s538 = scalar_lea.smem [#allocation2], 14
    %539 = sst [smem:[%s538]] %s465
    %s540 = scalar_lea.smem [#allocation2], 15
    %541 = sst [smem:[%s540]] %s509
    // Predicated region
    $region6: #{koemorph_loss.1} parent=1 // pred_check
      _
    $region7: #{koemorph_loss.1} parent=1 // pred_check_branch
      %543 = sbr.rel (0) target = $region9
    $region8: #{koemorph_loss.1} parent=1 // pred_region
      %s545 = ssub.s32 16, 16
      %546 = vsyncadd [#allocation3], %s545
      %s548 = sshll.u32 %s1, 4
      %s549 = int_to_ptr.vmem [resolvable:$true] %s548
      %551 = dma.smem_to_vmem [#allocation2], 16, %s549, [#allocation3]
    $region9: #{koemorph_loss.1} parent=1 // pred_fallthru
      _
    // Predicated region
    $region10: #{koemorph_loss.1} parent=1 // pred_check
      _
    $region11: #{koemorph_loss.1} parent=1 // pred_check_branch
      %553 = sbr.rel (0) target = $region13
    $region12: #{koemorph_loss.1} parent=1 // pred_region
      %554 = dma.done [#allocation3], 16
    $region13: #{koemorph_loss.1} parent=1 // pred_fallthru
      _
    %555 = sfence
    %556 = vsyncpa [#allocation3], 1

</llo_original>
